<compile_context>
chip_gen: v6e
topology: v6e:2x2x1
jax: 0.10.0
libtpu: 0.0.40
codegen_flags: <defaults>
</compile_context>

<pallas_src>
import math
from functools import partial

import jax
import jax.numpy as jnp
from jax import lax
from jax.scipy.linalg import solve_triangular
from jax.experimental import pallas as pl
from jax.experimental.pallas import tpu as pltpu

_SQRT5 = math.sqrt(5.0)


def _round_up(x: int, m: int) -> int:
    return ((x + m - 1) // m) * m


# ---------------------------------------------------------------------------
# Kernels: Matern-5/2 features + fused head matmul.
#   a = sqrt(5)/ell,  c = 5/(3*ell^2),  s2 = sigma^2,  r = |s_i - s'_j|
#   K      = s2 * (1 + a r + c r^2) * exp(-a r)
#   dK/dt  = -s2 * c * (1 + a r) * exp(-a r) * (s_i - s'_j) * ds_i/dt
# ---------------------------------------------------------------------------
def _mean_kernel(st_ref, stau_ref, w_ref, b_ref, out_ref, *, a, c, s2):
    delta = st_ref[...] - stau_ref[...]              # (TB, NT)
    r = jnp.abs(delta)
    e = jnp.exp(-a * r)                              # one EUP transcendental / elem
    feats = (s2 * e) * (1.0 + a * r + c * (r * r))
    out_ref[...] = jnp.dot(feats, w_ref[...],
                           preferred_element_type=jnp.float32) + b_ref[...]


def _mean_grad_kernel(st_ref, dsdt_ref, stau_ref, w_ref, b_ref, out_ref,
                      *, a, c, s2):
    d_pad = w_ref.shape[1]
    tb = st_ref.shape[0]
    delta = st_ref[...] - stau_ref[...]              # (TB, NT)
    r = jnp.abs(delta)
    e = jnp.exp(-a * r)
    k_feats = (s2 * e) * (1.0 + a * r + c * (r * r))
    dk_feats = (-s2 * c) * (1.0 + a * r) * e * delta * dsdt_ref[...]
    # fuse both matmuls into one MXU push: [K ; dK] @ w
    x = jnp.concatenate([k_feats, dk_feats], axis=0)                 # (2*TB, NT)
    y = jnp.dot(x, w_ref[...], preferred_element_type=jnp.float32)   # (2*TB, Dp)
    out_ref[:, :d_pad] = y[:tb, :] + b_ref[...]      # m  (bias only on m)
    out_ref[:, d_pad:] = y[tb:, :]                   # dm/dt


# ---------------------------------------------------------------------------
# Wrappers: pad to lane/sublane-friendly shapes, set up grid + BlockSpecs.
# ---------------------------------------------------------------------------
def _pad_operands(s_t, s_tau, w, b, block_b):
    bs = s_t.shape[0]
    n_tau, d = w.shape
    d_pad = _round_up(d, 128)            # lane-dense output columns
    nt_pad = _round_up(n_tau, 8)         # sublane-aligned contraction dim
    tb = min(_round_up(bs, 8), block_b)  # rows per grid step
    bs_pad = _round_up(bs, tb)
    s_t_p = jnp.pad(s_t.astype(jnp.float32), (0, bs_pad - bs)).reshape(bs_pad, 1)
    s_tau_p = jnp.pad(s_tau.astype(jnp.float32), (0, nt_pad - n_tau),
                      mode="edge").reshape(1, nt_pad)
    w_p = jnp.pad(w.astype(jnp.float32),
                  ((0, nt_pad - n_tau), (0, d_pad - d)))   # zero pad -> exact
    b_p = jnp.pad(b.astype(jnp.float32), (0, d_pad - d)).reshape(1, d_pad)
    return s_t_p, s_tau_p, w_p, b_p, bs, d, bs_pad, d_pad, nt_pad, tb


@partial(jax.jit, static_argnames=("lengthscale", "sigma2", "block_b"))
def matern52_head(s_t, s_tau, w, b, *, lengthscale, sigma2, block_b=256):
    """m(t) = K(t, tau) @ w + b in a single Pallas kernel."""
    (s_t_p, s_tau_p, w_p, b_p,
     bs, d, bs_pad, d_pad, nt_pad, tb) = _pad_operands(s_t, s_tau, w, b, block_b)
    a = _SQRT5 / lengthscale
    c = 5.0 / (3.0 * lengthscale * lengthscale)
    kern = partial(_mean_kernel, a=float(a), c=float(c), s2=float(sigma2))
    out = pl.pallas_call(
        kern,
        out_shape=jax.ShapeDtypeStruct((bs_pad, d_pad), jnp.float32),
        grid=(bs_pad // tb,),
        in_specs=[
            pl.BlockSpec((tb, 1), lambda i: (i, 0)),          # warped t
            pl.BlockSpec((1, nt_pad), lambda i: (0, 0)),      # warped tau
            pl.BlockSpec((nt_pad, d_pad), lambda i: (0, 0)),  # head weights
            pl.BlockSpec((1, d_pad), lambda i: (0, 0)),       # bias
        ],
        out_specs=pl.BlockSpec((tb, d_pad), lambda i: (i, 0)),
        compiler_params=pltpu.CompilerParams(dimension_semantics=("parallel",)),
    )(s_t_p, s_tau_p, w_p, b_p)
    return out[:bs, :d]


@partial(jax.jit, static_argnames=("lengthscale", "sigma2", "block_b"))
def matern52_head_grad(s_t, dsdt, s_tau, w, b, *, lengthscale, sigma2,
                       block_b=256):
    """(m(t), dm/dt) with both matmuls fused into one MXU op, one launch."""
    (s_t_p, s_tau_p, w_p, b_p,
     bs, d, bs_pad, d_pad, nt_pad, tb) = _pad_operands(s_t, s_tau, w, b, block_b)
    dsdt_p = jnp.pad(dsdt.astype(jnp.float32), (0, bs_pad - bs)).reshape(bs_pad, 1)
    a = _SQRT5 / lengthscale
    c = 5.0 / (3.0 * lengthscale * lengthscale)
    kern = partial(_mean_grad_kernel, a=float(a), c=float(c), s2=float(sigma2))
    out = pl.pallas_call(
        kern,
        out_shape=jax.ShapeDtypeStruct((bs_pad, 2 * d_pad), jnp.float32),
        grid=(bs_pad // tb,),
        in_specs=[
            pl.BlockSpec((tb, 1), lambda i: (i, 0)),          # warped t
            pl.BlockSpec((tb, 1), lambda i: (i, 0)),          # d(warp)/dt
            pl.BlockSpec((1, nt_pad), lambda i: (0, 0)),      # warped tau
            pl.BlockSpec((nt_pad, d_pad), lambda i: (0, 0)),  # head weights
            pl.BlockSpec((1, d_pad), lambda i: (0, 0)),       # bias
        ],
        out_specs=pl.BlockSpec((tb, 2 * d_pad), lambda i: (i, 0)),
        compiler_params=pltpu.CompilerParams(dimension_semantics=("parallel",)),
    )(s_t_p, dsdt_p, s_tau_p, w_p, b_p)
    m = out[:bs, :d]
    dm = out[:bs, d_pad:d_pad + d]
    return m, dm


# ---------------------------------------------------------------------------
# MeanGLM wrapper (forward-pass semantics of the PyTorch module)
# ---------------------------------------------------------------------------
class MeanGLMPallas:
    def __init__(self, num_outputs, t_span, n_tau, *, whitened_param=True,
                 kernel="matern52", apply_input_warping=True, len_init=1.0,
                 seed=0):
        if kernel != "matern52":
            raise ValueError(f"Unsupported kernel {kernel!r}")
        nu = 1.0
        self.lo = float(t_span[0] - nu)
        self.hi = float(t_span[1] + nu)
        self.num_outputs = int(num_outputs)
        self.lengthscale = float(len_init)   # MeanGLM default (no train data)
        self.sigma2 = 1.0
        self.whitened_param = bool(whitened_param)
        self.apply_input_warping = bool(apply_input_warping)
        # Kumaraswamy warping at init: a = b = 1  ->  linear rescale to [0, 1].
        # TODO(synk): dynamic_update_bounds / trainable warping params not ported.
        self.warp_a = 1.0
        self.warp_b = 1.0
        self.tau = jnp.linspace(self.lo, self.hi, n_tau).astype(jnp.float32)

        # init-time whitening buffer  C = chol(K(tau,tau) + eps*I)
        # TODO(synk): Cholesky / triangular solve stay in plain XLA (no Pallas op).
        s_tau, _ = self._warp(self.tau)
        Ktt = self._matern52_ref(s_tau[:, None], s_tau[None, :])
        eps = 1e-6
        C = jnp.linalg.cholesky(Ktt + eps * jnp.eye(n_tau, dtype=jnp.float32))
        while (not bool(jnp.all(jnp.isfinite(C)))) and eps < 1e-1:
            eps *= 10.0  # f32 jitter escalation for this very smooth kernel
            C = jnp.linalg.cholesky(Ktt + eps * jnp.eye(n_tau, dtype=jnp.float32))
        self.eps = eps
        self.C = C

        # reset_parameters(): whitened raw_w ~ N(0, 1), b = 0
        key = jax.random.PRNGKey(seed)
        self.raw_w = jax.random.normal(key, (n_tau, num_outputs), jnp.float32)
        self.b = jnp.zeros((num_outputs,), jnp.float32)
        # TODO(synk): learn_inducing_locations / train_glm CV len_init selection
        # (pure training-time bookkeeping) not ported.

    # ---------------- plain-JAX glue ----------------
    def _warp(self, t):
        t = t.astype(jnp.float32)
        span = self.hi - self.lo
        if not self.apply_input_warping:
            return t, jnp.ones_like(t)
        u = jnp.clip((t - self.lo) / span, 1e-6, 1.0 - 1e-6)
        a, b = self.warp_a, self.warp_b
        ua = u ** a
        s = 1.0 - (1.0 - ua) ** b
        dsdt = (a * b) * (u ** (a - 1.0)) * ((1.0 - ua) ** (b - 1.0)) / span
        return s, dsdt

    def _matern52_ref(self, sx, sy):
        a = _SQRT5 / self.lengthscale
        c = 5.0 / (3.0 * self.lengthscale ** 2)
        r = jnp.abs(sx - sy)
        return (self.sigma2 * (1.0 + a * r + c * r * r)
                * jnp.exp(-a * r)).astype(jnp.float32)

    @property
    def w(self):
        if self.whitened_param:
            return solve_triangular(self.C.T, self.raw_w, lower=False)
        return self.raw_w

    # ---------------- forward (hot path -> Pallas) ----------------
    def forward(self, t, return_grad=False):
        t = jnp.atleast_1d(jnp.asarray(t, jnp.float32))
        s_t, dsdt = self._warp(t)
        s_tau, _ = self._warp(self.tau)
        w = self.w
        if not return_grad:
            return matern52_head(s_t, s_tau, w, self.b,
                                 lengthscale=self.lengthscale, sigma2=self.sigma2)
        return matern52_head_grad(s_t, dsdt, s_tau, w, self.b,
                                  lengthscale=self.lengthscale, sigma2=self.sigma2)

    __call__ = forward


if __name__ == "__main__":
    num_outputs = 8
    n_tau = 32
    bs = 16
    t_span = (0.0, 1.0)

    model = MeanGLMPallas(num_outputs, t_span, n_tau, seed=0)
    kt, kw, kb = jax.random.split(jax.random.PRNGKey(0), 3)
    t = jnp.sort(jax.random.uniform(kt, (bs,), dtype=jnp.float32))

    # end-to-end module forward (whitened parameters)
    m = model(t)                             # (bs, num_outputs)
    m_g, dm_g = model(t, return_grad=True)   # single fused Pallas launch
    jax.block_until_ready((m, m_g, dm_g))
    assert m.shape == (bs, num_outputs)
    assert m_g.shape == (bs, num_outputs) and dm_g.shape == (bs, num_outputs)
    assert bool(jnp.all(jnp.isfinite(m)))
    assert bool(jnp.all(jnp.isfinite(m_g))) and bool(jnp.all(jnp.isfinite(dm_g)))

    # direct kernel check against a plain-JAX reference (well-scaled weights)
    w_test = 0.05 * jax.random.normal(kw, (n_tau, num_outputs), jnp.float32)
    b_test = 0.1 * jax.random.normal(kb, (num_outputs,), jnp.float32)
    s_t, dsdt = model._warp(t)
    s_tau, _ = model._warp(model.tau)
    km = matern52_head(s_t, s_tau, w_test, b_test,
                       lengthscale=model.lengthscale, sigma2=model.sigma2)
    km2, kdm = matern52_head_grad(s_t, dsdt, s_tau, w_test, b_test,
                                  lengthscale=model.lengthscale,
                                  sigma2=model.sigma2)
    jax.block_until_ready((km, km2, kdm))

    a = _SQRT5 / model.lengthscale
    c = 5.0 / (3.0 * model.lengthscale ** 2)
    delta = s_t[:, None] - s_tau[None, :]
    r = jnp.abs(delta)
    K_ref = model._matern52_ref(s_t[:, None], s_tau[None, :])
    dK_ref = (-model.sigma2 * c) * (1.0 + a * r) * jnp.exp(-a * r) * delta \
             * dsdt[:, None]
    m_ref = jnp.dot(K_ref, w_test, precision=lax.Precision.HIGHEST) + b_test
    dm_ref = jnp.dot(dK_ref, w_test, precision=lax.Precision.HIGHEST)

    tol_m = 2e-2 * jnp.dot(jnp.abs(K_ref), jnp.abs(w_test)) + 1e-3
    tol_dm = 2e-2 * jnp.dot(jnp.abs(dK_ref), jnp.abs(w_test)) + 1e-3
    assert bool(jnp.all(jnp.abs(km - m_ref) <= tol_m))
    assert bool(jnp.all(jnp.abs(km2 - m_ref) <= tol_m))
    assert bool(jnp.all(jnp.abs(kdm - dm_ref) <= tol_dm))

    print("KERNEL_OK")
</pallas_src>

<mosaic_0001>
module attributes {stable_mosaic.version = 11 : i64} {
  func.func @_mean_kernel(%arg0: i32, %arg1: memref<16x1xf32, #tpu.memory_space<vmem>>, %arg2: memref<1x32xf32, #tpu.memory_space<vmem>>, %arg3: memref<32x128xf32, #tpu.memory_space<vmem>>, %arg4: memref<1x128xf32, #tpu.memory_space<vmem>>, %arg5: memref<16x128xf32, #tpu.memory_space<vmem>>) attributes {dimension_semantics = [#tpu.dimension_semantics<parallel>], iteration_bounds = array<i64: 1>, scalar_prefetch = 0 : i64, scratch_operands = 0 : i64, tpu.core_type = #tpu.core_type<tc>, window_params = [{transform_indices = @transform_0, window_bounds = array<i64: 16, 1>}, {pipeline_mode = #tpu.pipeline_mode<synchronous>, transform_indices = @transform_1, window_bounds = array<i64: 1, 32>}, {pipeline_mode = #tpu.pipeline_mode<synchronous>, transform_indices = @transform_2, window_bounds = array<i64: 32, 128>}, {pipeline_mode = #tpu.pipeline_mode<synchronous>, transform_indices = @transform_3, window_bounds = array<i64: 1, 128>}, {transform_indices = @transform_4, window_bounds = array<i64: 16, 128>}]} {
    %c0 = arith.constant 0 : index
    %c0_0 = arith.constant 0 : index
    %0 = vector.load %arg1[%c0, %c0_0] : memref<16x1xf32, #tpu.memory_space<vmem>>, vector<16x1xf32>
    %c0_1 = arith.constant 0 : index
    %c0_2 = arith.constant 0 : index
    %1 = vector.load %arg2[%c0_1, %c0_2] : memref<1x32xf32, #tpu.memory_space<vmem>>, vector<1x32xf32>
    %2 = vector.broadcast %0 : vector<16x1xf32> to vector<16x32xf32>
    %3 = vector.broadcast %1 : vector<1x32xf32> to vector<16x32xf32>
    %4 = arith.subf %2, %3 : vector<16x32xf32>
    %5 = math.absf %4 : vector<16x32xf32>
    %cst = arith.constant -2.23606801 : f32
    %6 = vector.broadcast %cst : f32 to vector<16x32xf32>
    %7 = arith.mulf %6, %5 : vector<16x32xf32>
    %8 = math.exp %7 : vector<16x32xf32>
    %cst_3 = arith.constant 1.000000e+00 : f32
    %9 = vector.broadcast %cst_3 : f32 to vector<16x32xf32>
    %10 = arith.mulf %9, %8 : vector<16x32xf32>
    %cst_4 = arith.constant 2.23606801 : f32
    %11 = vector.broadcast %cst_4 : f32 to vector<16x32xf32>
    %12 = arith.mulf %11, %5 : vector<16x32xf32>
    %cst_5 = arith.constant 1.000000e+00 : f32
    %13 = vector.broadcast %cst_5 : f32 to vector<16x32xf32>
    %14 = arith.addf %13, %12 : vector<16x32xf32>
    %15 = arith.mulf %5, %5 : vector<16x32xf32>
    %cst_6 = arith.constant 1.66666663 : f32
    %16 = vector.broadcast %cst_6 : f32 to vector<16x32xf32>
    %17 = arith.mulf %16, %15 : vector<16x32xf32>
    %18 = arith.addf %14, %17 : vector<16x32xf32>
    %19 = arith.mulf %10, %18 : vector<16x32xf32>
    %c0_7 = arith.constant 0 : index
    %c0_8 = arith.constant 0 : index
    %20 = vector.load %arg3[%c0_7, %c0_8] : memref<32x128xf32, #tpu.memory_space<vmem>>, vector<32x128xf32>
    %cst_9 = arith.constant dense<0.000000e+00> : vector<16x128xf32>
    %21 = tpu.matmul %19, %20, %cst_9 {dimension_numbers = #tpu.dot_dimension_numbers<[1], [0], [0], [1], [0, 0, 1, 1], [], []>} : vector<16x32xf32>, vector<32x128xf32>, vector<16x128xf32> -> vector<16x128xf32>
    %c0_10 = arith.constant 0 : index
    %c0_11 = arith.constant 0 : index
    %22 = vector.load %arg4[%c0_10, %c0_11] : memref<1x128xf32, #tpu.memory_space<vmem>>, vector<1x128xf32>
    %23 = vector.broadcast %22 : vector<1x128xf32> to vector<16x128xf32>
    %24 = arith.addf %21, %23 : vector<16x128xf32>
    %c0_12 = arith.constant 0 : index
    %c0_13 = arith.constant 0 : index
    %25 = vector.load %arg5[%c0_12, %c0_13] : memref<16x128xf32, #tpu.memory_space<vmem>>, vector<16x128xf32>
    tpu.vector_store %arg5[%c0_12, %c0_13], %24 {strides = array<i32>} : memref<16x128xf32, #tpu.memory_space<vmem>>, vector<16x128xf32>,
    return
  }
  func.func @transform_0(%arg0: i32) -> (i32, i32) {
    %c0_i32 = arith.constant 0 : i32
    %c0_i32_0 = arith.constant 0 : i32
    return %arg0, %c0_i32 : i32, i32
  }
  func.func @transform_1(%arg0: i32) -> (i32, i32) {
    %c0_i32 = arith.constant 0 : i32
    %c0_i32_0 = arith.constant 0 : i32
    %c0_i32_1 = arith.constant 0 : i32
    return %c0_i32, %c0_i32_0 : i32, i32
  }
  func.func @transform_2(%arg0: i32) -> (i32, i32) {
    %c0_i32 = arith.constant 0 : i32
    %c0_i32_0 = arith.constant 0 : i32
    %c0_i32_1 = arith.constant 0 : i32
    return %c0_i32, %c0_i32_0 : i32, i32
  }
  func.func @transform_3(%arg0: i32) -> (i32, i32) {
    %c0_i32 = arith.constant 0 : i32
    %c0_i32_0 = arith.constant 0 : i32
    %c0_i32_1 = arith.constant 0 : i32
    return %c0_i32, %c0_i32_0 : i32, i32
  }
  func.func @transform_4(%arg0: i32) -> (i32, i32) {
    %c0_i32 = arith.constant 0 : i32
    %c0_i32_0 = arith.constant 0 : i32
    return %arg0, %c0_i32 : i32, i32
  }
}

</mosaic_0001>

<llo_original>
// kernel: matern52_head.1
$region0: #{matern52_head.1}
  #allocation0 [shape = 'u32[]', space=smem, size = 0x4, offset = 0x4, fixed_abs, tag = 'smem constant byte address 0x4 - core index']
  #allocation1 [shape = 'u32[144,128]{1,0:T(1,128)}', space=vmem, size = 0x12000, scoped, tag = 'internal scratch']
  %s0 = inlined_call_operand.vmem [shape: f32[16,1], index: 0, kind: input, shape index: {}]
  %s1 = inlined_call_operand.vmem [shape: f32[1,32], index: 1, kind: input, shape index: {}]
  %s2 = inlined_call_operand.vmem [shape: f32[32,128], index: 2, kind: input, shape index: {}]
  %s3 = inlined_call_operand.vmem [shape: f32[1,128], index: 3, kind: input, shape index: {}]
  %s4 = inlined_call_operand.vmem [shape: f32[16,128], index: 4, kind: output, shape index: {}]
  %s5 = sld [smem:[#allocation0]]
  $region26: #{matern52_head.1} parent=0
    _
  %s7 = ssub.s32 1, %s5
  %s8 = scalar_select 0, %s7, %s5
  // Predicated region
  $region2: #{matern52_head.1} parent=0 // pred_check
    _
  $region3: #{matern52_head.1} parent=0 // pred_check_branch
    %10 = sbr.rel (0) target = $region5
  $region4: #{matern52_head.1} parent=0 // pred_region
    _
  $region5: #{matern52_head.1} parent=0 // pred_fallthru
    _
  // Predicated region
  $region6: #{matern52_head.1} parent=0 // pred_check
    _
  $region7: #{matern52_head.1} parent=0 // pred_check_branch
    %12 = sbr.rel (0) target = $region9
  $region8: #{matern52_head.1} parent=0 // pred_region
    _
  $region9: #{matern52_head.1} parent=0 // pred_fallthru
    _
  // Predicated region
  $region10: #{matern52_head.1} parent=0 // pred_check
    _
  $region11: #{matern52_head.1} parent=0 // pred_check_branch
    %14 = sbr.rel (0) target = $region13
  $region12: #{matern52_head.1} parent=0 // pred_region
    _
  $region13: #{matern52_head.1} parent=0 // pred_fallthru
    _
  // Predicated region
  $region14: #{matern52_head.1} parent=0 // pred_check
    _
  $region15: #{matern52_head.1} parent=0 // pred_check_branch
    %16 = sbr.rel (0) target = $region17
  $region16: #{matern52_head.1} parent=0 // pred_region
    _
  $region17: #{matern52_head.1} parent=0 // pred_fallthru
    _
  %v17 = vld [vmem:[%s0] sm:$0xff]
  %v18 = vld [vmem:[%s0 + $0x8] sm:$0xff]
  %v19 = vld [vmem:[%s1] sm:$0x1]
  %21 = vset.pattern.permute.xlu0 0
  %22 = vperm.xlu0 %21, %v17
  %v23 = vpop.permute.xlu0 %22
  %26 = vset.pattern.permute.xlu0 0
  %27 = vperm.xlu0 %26, %v18
  %v28 = vpop.permute.xlu0 %27
  %v31 = vlaneseq
  %v32 = vshrl.u32 %v31, 7
  %v33 = vsub.s32 0, %v32
  %v34 = vrot.slane %v19, %v33
  %v36 = vsub.f32 %v23, %v34
  %v37 = vsub.f32 %v28, %v34
  %v38 = vand.u32 2147483647, %v36
  %v39 = vand.u32 2147483647, %v37
  %v40 = vmul.f32 %v38, -2.236068
  %v41 = vmul.f32 %v39, -2.236068
  %v42 = vmul.f32 %v40, 1.442695
  %v43 = vpow.pop %v42
  %v44 = vmul.f32 %v41, 1.442695
  %v45 = vpow.pop %v44
  %v46 = vmul.f32 %v38, 2.236068
  %v47 = vmul.f32 %v39, 2.236068
  %v48 = vadd.f32 %v46, 1.0
  %v49 = vadd.f32 %v47, 1.0
  %v50 = vmul.f32 %v38, %v38
  %v51 = vmul.f32 %v39, %v39
  %v52 = vmul.f32 %v50, 1.6666666
  %v53 = vmul.f32 %v51, 1.6666666
  %v54 = vadd.f32 %v48, %v52
  %v55 = vadd.f32 %v49, %v53
  %v56 = vmul.f32 %v43, %v54
  %v57 = vmul.f32 %v45, %v55
  %v58 = vld [vmem:[%s2] sm:$0xff]
  %v59 = vld [vmem:[%s2 + $0x8] sm:$0xff]
  %v60 = vld [vmem:[%s2 + $0x10] sm:$0xff]
  %v61 = vld [vmem:[%s2 + $0x18] sm:$0xff]
  %v62 = vld [vmem:[%s3] sm:$0x1]
  %v64 = vlaneseq
  %v65 = vshrl.u32 %v64, 7
  %v66 = vsub.s32 0, %v65
  %v67 = vrot.slane %v62, %v66
  %vm69 = vcmask 261120
  %v71 = vsel %vm69, %v56, 0
  %v74 = vsel %vm69, %v57, 0
  %76 = vmatprep.subr.mxu0 0.0
  %77 = vmatpush1.msra.mxu0 0.0
  %78 = vmatprep.subr.mxu0 0.0
  %79 = vmatpush1.msra.mxu0 0.0
  %80 = vmatprep.subr.mxu0 0.0
  %81 = vmatpush1.msra.mxu0 0.0
  %82 = vmatprep.subr.mxu0 0.0
  %83 = vmatpush1.msra.mxu0 0.0
  %84 = vmatprep.subr.mxu0 0.0
  %85 = vmatpush1.msra.mxu0 0.0
  %86 = vmatprep.subr.mxu0 0.0
  %87 = vmatpush1.msra.mxu0 0.0
  %88 = vmatprep.subr.mxu0 0.0
  %89 = vmatpush1.msra.mxu0 0.0
  %90 = vmatprep.subr.mxu0 0.0
  %91 = vmatpush1.msra.mxu0 0.0
  %92 = vmatprep.subr.mxu0 0.0
  %93 = vmatpush1.msra.mxu0 0.0
  %94 = vmatprep.subr.mxu0 0.0
  %95 = vmatpush1.msra.mxu0 0.0
  %96 = vmatprep.subr.mxu0 0.0
  %97 = vmatpush1.msra.mxu0 0.0
  %98 = vmatprep.subr.mxu0 0.0
  %99 = vmatpush1.msra.mxu0 0.0
  %100 = vmatprep.subr.mxu0 0.0
  %101 = vmatpush1.msra.mxu0 %v61
  %102 = vmatprep.subr.mxu0 0.0
  %103 = vmatpush1.msra.mxu0 %v60
  %104 = vmatprep.subr.mxu0 0.0
  %105 = vmatpush1.msra.mxu0 %v59
  %106 = vmatprep.subr.mxu0 0.0
  %107 = vmatpush1.msra.mxu0 %v58
  %108 = vmatprep.subr.mxu0 0.0
  %109 = vmatpush2.msra.mxu0 0.0
  %110 = vmatprep.subr.mxu0 0.0
  %111 = vmatpush2.msra.mxu0 0.0
  %112 = vmatprep.subr.mxu0 0.0
  %113 = vmatpush2.msra.mxu0 0.0
  %114 = vmatprep.subr.mxu0 0.0
  %115 = vmatpush2.msra.mxu0 0.0
  %116 = vmatprep.subr.mxu0 0.0
  %117 = vmatpush2.msra.mxu0 0.0
  %118 = vmatprep.subr.mxu0 0.0
  %119 = vmatpush2.msra.mxu0 0.0
  %120 = vmatprep.subr.mxu0 0.0
  %121 = vmatpush2.msra.mxu0 0.0
  %122 = vmatprep.subr.mxu0 0.0
  %123 = vmatpush2.msra.mxu0 0.0
  %124 = vmatprep.subr.mxu0 0.0
  %125 = vmatpush2.msra.mxu0 0.0
  %126 = vmatprep.subr.mxu0 0.0
  %127 = vmatpush2.msra.mxu0 0.0
  %128 = vmatprep.subr.mxu0 0.0
  %129 = vmatpush2.msra.mxu0 0.0
  %130 = vmatprep.subr.mxu0 0.0
  %131 = vmatpush2.msra.mxu0 0.0
  %132 = vmatprep.subr.mxu0 0.0
  %133 = vmatpush2.msra.mxu0 0.0
  %134 = vmatprep.subr.mxu0 0.0
  %135 = vmatpush2.msra.mxu0 0.0
  %136 = vmatprep.subr.mxu0 0.0
  %137 = vmatpush2.msra.mxu0 0.0
  %138 = vmatprep.subr.mxu0 0.0
  %139 = vmatpush2.msra.mxu0 0.0
  %140 = vmatprep.mubr.f32.mxu0 0.0
  %141 = vmatmul.mubr.f32.gmra.mxu0 %v71
  %v142 = vpop.f32.mrf.mxu0
  %v143 = vadd.f32 %v67, %v142
  %v144 = vpop.f32.mrf.mxu0
  %145 = vmatprep.mubr.f32.mxu0 0.0
  %146 = vmatmul.mubr.f32.gmra.mxu0 %v74
  %v147 = vpop.f32.mrf.mxu0
  %v148 = vadd.f32 %v67, %v147
  %v149 = vpop.f32.mrf.mxu0
  %150 = vdwg.mxu0
  %151 = vst [vmem:[%s4] sm:$0xff] %v143
  %152 = vst [vmem:[%s4 + $0x8] sm:$0xff] %v148
  // Predicated region
  $region18: #{matern52_head.1} parent=0 // pred_check
    _
  $region19: #{matern52_head.1} parent=0 // pred_check_branch
    %154 = sbr.rel (0) target = $region21
  $region20: #{matern52_head.1} parent=0 // pred_region
    _
  $region21: #{matern52_head.1} parent=0 // pred_fallthru
    _
  // Predicated region
  $region22: #{matern52_head.1} parent=0 // pred_check
    _
  $region23: #{matern52_head.1} parent=0 // pred_check_branch
    %156 = sbr.rel (0) target = $region25
  $region24: #{matern52_head.1} parent=0 // pred_region
    _
  $region25: #{matern52_head.1} parent=0 // pred_fallthru
    _

</llo_original>
